<compile_context>
chip_gen: v5e
topology: v5e:2x2
jax: 0.10.0
libtpu: 0.0.40
codegen_flags: <defaults>
</compile_context>

<pallas_src>
import jax
import jax.numpy as jnp
from jax.experimental import pallas as pl
from jax.experimental.pallas import tpu as pltpu


def _round_up(x: int, m: int) -> int:
    return ((x + m - 1) // m) * m


def actor_kernel(s_ref, w1_ref, b1_ref, w2_ref, b2_ref, o_ref):
    # Layer 1: Linear + ReLU. MXU matmul with f32 accumulation (bf16 inputs
    # use the bf16 MXU path; f32 inputs use the f32 path).
    h = jnp.dot(s_ref[...], w1_ref[...], preferred_element_type=jnp.float32)
    h = jnp.maximum(h + b1_ref[...].astype(jnp.float32), 0.0)
    # Layer 2: Linear + Tanh. Keep activations in f32 for the second matmul
    # (cast the tiny resident weight tile up instead of downcasting h).
    y = jnp.dot(h, w2_ref[...].astype(jnp.float32),
                preferred_element_type=jnp.float32)
    y = y + b2_ref[...].astype(jnp.float32)
    o_ref[...] = jnp.tanh(y).astype(o_ref.dtype)


def actor_forward(s, w1_t, b1, w2_t, b2, *, batch_tile: int = 1024,
                  stream_dtype=None, out_dtype=None):
    """s: (B, s_dim); w1_t: (s_dim, hidden); b1: (1, hidden);
    w2_t: (hidden, a_dim); b2: (1, a_dim)  ->  (B, a_dim)

    stream_dtype: optional dtype (e.g. jnp.bfloat16) to cast the streamed
                  state to — halves HBM read traffic. Compute stays f32.
    out_dtype:    optional output dtype (default: s.dtype).
    """
    B, s_dim = s.shape
    hidden = w1_t.shape[1]
    a_dim = w2_t.shape[1]

    in_dtype = s.dtype if stream_dtype is None else jnp.dtype(stream_dtype)
    out_dtype = s.dtype if out_dtype is None else jnp.dtype(out_dtype)

    # Sublane granule: 8 rows/vreg for 32-bit, 16 for bf16 (sub-32-bit packing).
    granule = 16 if jnp.dtype(in_dtype).itemsize < 4 else 8

    # Adaptive batch tile: never more than `batch_tile`, never more than one
    # granule of padded rows per tile.
    TB = min(batch_tile, _round_up(B, granule))
    n_tiles = -(-B // TB)
    TB = _round_up(-(-B // n_tiles), granule)
    Bp = TB * n_tiles

    # Only the batch axis is ever padded; feature dims are streamed as-is.
    if Bp != B or jnp.dtype(s.dtype) != in_dtype:
        s_in = jnp.zeros((Bp, s_dim), in_dtype).at[:B].set(s.astype(in_dtype))
    else:
        s_in = s

    # Advisory cost estimate from the TRUE (unpadded) dims.
    param_bytes = sum(int(a.size) * a.dtype.itemsize for a in (w1_t, b1, w2_t, b2))
    bytes_accessed = (B * s_dim * jnp.dtype(in_dtype).itemsize
                      + B * a_dim * jnp.dtype(out_dtype).itemsize
                      + param_bytes)
    cost = pl.CostEstimate(
        flops=2 * B * (s_dim * hidden + hidden * a_dim),
        transcendentals=B * a_dim,
        bytes_accessed=bytes_accessed,
    )

    out_p = pl.pallas_call(
        actor_kernel,
        out_shape=jax.ShapeDtypeStruct((Bp, a_dim), out_dtype),
        grid=(n_tiles,),
        in_specs=[
            # State streams over the batch axis; feature dim is full-extent
            # (legal: last block dim equals the array dim), so no lane padding.
            pl.BlockSpec((TB, s_dim), lambda i: (i, 0)),
            # Weights/biases: full-extent blocks, constant index_map -> resident.
            pl.BlockSpec((s_dim, hidden), lambda i: (0, 0)),
            pl.BlockSpec((1, hidden), lambda i: (0, 0)),
            pl.BlockSpec((hidden, a_dim), lambda i: (0, 0)),
            pl.BlockSpec((1, a_dim), lambda i: (0, 0)),
        ],
        # True-width output: 32x less writeback than padding a_dim to 128.
        out_specs=pl.BlockSpec((TB, a_dim), lambda i: (i, 0)),
        compiler_params=pltpu.CompilerParams(
            dimension_semantics=("parallel",),
        ),
        cost_estimate=cost,
    )(s_in, w1_t, b1, w2_t, b2)

    return out_p[:B] if Bp != B else out_p


def actor_ref(s, w1_t, b1, w2_t, b2):
    """Pure-JAX reference mirroring the PyTorch module."""
    h = jnp.maximum(s @ w1_t + b1, 0.0)
    return jnp.tanh(h @ w2_t + b2)


if __name__ == "__main__":
    # Small, deterministic setup consistent with Actor(s_dim, a_dim, hidden).
    B, s_dim, hidden, a_dim = 8, 16, 32, 4

    key = jax.random.PRNGKey(0)
    ks, kw1, kb1, kw2, kb2 = jax.random.split(key, 5)

    s = jax.random.normal(ks, (B, s_dim), dtype=jnp.float32)

    # Deterministic param init (PyTorch-Linear-style uniform bounds),
    # stored pre-transposed as (in, out).
    bound1 = 1.0 / jnp.sqrt(jnp.float32(s_dim))
    bound2 = 1.0 / jnp.sqrt(jnp.float32(hidden))
    w1_t = jax.random.uniform(kw1, (s_dim, hidden), jnp.float32, -bound1, bound1)
    b1 = jax.random.uniform(kb1, (1, hidden), jnp.float32, -bound1, bound1)
    w2_t = jax.random.uniform(kw2, (hidden, a_dim), jnp.float32, -bound2, bound2)
    b2 = jax.random.uniform(kb2, (1, a_dim), jnp.float32, -bound2, bound2)

    ref = actor_ref(s, w1_t, b1, w2_t, b2)

    # f32 path: bit-for-bit-close to the reference.
    out = jax.block_until_ready(actor_forward(s, w1_t, b1, w2_t, b2))
    assert out.shape == (B, a_dim)
    assert jnp.allclose(out, ref, atol=1e-5, rtol=1e-5)

    # bf16-streamed path (halved HBM traffic on streamed arrays + bf16
    # weights); f32 accumulation/activations inside -> only input rounding.
    out_bf16 = jax.block_until_ready(
        actor_forward(s,
                      w1_t.astype(jnp.bfloat16), b1,
                      w2_t.astype(jnp.bfloat16), b2,
                      stream_dtype=jnp.bfloat16, out_dtype=jnp.bfloat16))
    assert out_bf16.shape == (B, a_dim)
    assert jnp.allclose(out_bf16.astype(jnp.float32), ref, atol=5e-2, rtol=5e-2)

    print("KERNEL_OK")
</pallas_src>

<mosaic_0001>
module attributes {stable_mosaic.version = 11 : i64} {
  func.func @actor_kernel(%arg0: i32, %arg1: memref<8x16xf32, #tpu.memory_space<vmem>>, %arg2: memref<16x32xf32, #tpu.memory_space<vmem>>, %arg3: memref<1x32xf32, #tpu.memory_space<vmem>>, %arg4: memref<32x4xf32, #tpu.memory_space<vmem>>, %arg5: memref<1x4xf32, #tpu.memory_space<vmem>>, %arg6: memref<8x4xf32, #tpu.memory_space<vmem>>) attributes {dimension_semantics = [#tpu.dimension_semantics<parallel>], iteration_bounds = array<i64: 1>, scalar_prefetch = 0 : i64, scratch_operands = 0 : i64, tpu.core_type = #tpu.core_type<tc>, window_params = [{transform_indices = @transform_0, window_bounds = array<i64: 8, 16>}, {pipeline_mode = #tpu.pipeline_mode<synchronous>, transform_indices = @transform_1, window_bounds = array<i64: 16, 32>}, {pipeline_mode = #tpu.pipeline_mode<synchronous>, transform_indices = @transform_2, window_bounds = array<i64: 1, 32>}, {pipeline_mode = #tpu.pipeline_mode<synchronous>, transform_indices = @transform_3, window_bounds = array<i64: 32, 4>}, {pipeline_mode = #tpu.pipeline_mode<synchronous>, transform_indices = @transform_4, window_bounds = array<i64: 1, 4>}, {transform_indices = @transform_5, window_bounds = array<i64: 8, 4>}]} {
    %c0 = arith.constant 0 : index
    %c0_0 = arith.constant 0 : index
    %0 = vector.load %arg1[%c0, %c0_0] : memref<8x16xf32, #tpu.memory_space<vmem>>, vector<8x16xf32>
    %c0_1 = arith.constant 0 : index
    %c0_2 = arith.constant 0 : index
    %1 = vector.load %arg2[%c0_1, %c0_2] : memref<16x32xf32, #tpu.memory_space<vmem>>, vector<16x32xf32>
    %cst = arith.constant dense<0.000000e+00> : vector<8x32xf32>
    %2 = tpu.matmul %0, %1, %cst {dimension_numbers = #tpu.dot_dimension_numbers<[1], [0], [0], [1], [0, 0, 1, 1], [], []>} : vector<8x16xf32>, vector<16x32xf32>, vector<8x32xf32> -> vector<8x32xf32>
    %c0_3 = arith.constant 0 : index
    %c0_4 = arith.constant 0 : index
    %3 = vector.load %arg3[%c0_3, %c0_4] : memref<1x32xf32, #tpu.memory_space<vmem>>, vector<1x32xf32>
    %4 = vector.broadcast %3 : vector<1x32xf32> to vector<8x32xf32>
    %5 = arith.addf %2, %4 : vector<8x32xf32>
    %cst_5 = arith.constant 0.000000e+00 : f32
    %6 = vector.broadcast %cst_5 : f32 to vector<8x32xf32>
    %7 = arith.maximumf %5, %6 : vector<8x32xf32>
    %c0_6 = arith.constant 0 : index
    %c0_7 = arith.constant 0 : index
    %8 = vector.load %arg4[%c0_6, %c0_7] : memref<32x4xf32, #tpu.memory_space<vmem>>, vector<32x4xf32>
    %cst_8 = arith.constant dense<0.000000e+00> : vector<8x4xf32>
    %9 = tpu.matmul %7, %8, %cst_8 {dimension_numbers = #tpu.dot_dimension_numbers<[1], [0], [0], [1], [0, 0, 1, 1], [], []>} : vector<8x32xf32>, vector<32x4xf32>, vector<8x4xf32> -> vector<8x4xf32>
    %c0_9 = arith.constant 0 : index
    %c0_10 = arith.constant 0 : index
    %10 = vector.load %arg5[%c0_9, %c0_10] : memref<1x4xf32, #tpu.memory_space<vmem>>, vector<1x4xf32>
    %11 = vector.broadcast %10 : vector<1x4xf32> to vector<8x4xf32>
    %12 = arith.addf %9, %11 : vector<8x4xf32>
    %13 = math.tanh %12 : vector<8x4xf32>
    %c0_11 = arith.constant 0 : index
    %c0_12 = arith.constant 0 : index
    %14 = vector.load %arg6[%c0_11, %c0_12] : memref<8x4xf32, #tpu.memory_space<vmem>>, vector<8x4xf32>
    tpu.vector_store %arg6[%c0_11, %c0_12], %13 {strides = array<i32>} : memref<8x4xf32, #tpu.memory_space<vmem>>, vector<8x4xf32>,
    return
  }
  func.func @transform_0(%arg0: i32) -> (i32, i32) {
    %c0_i32 = arith.constant 0 : i32
    %c0_i32_0 = arith.constant 0 : i32
    return %arg0, %c0_i32 : i32, i32
  }
  func.func @transform_1(%arg0: i32) -> (i32, i32) {
    %c0_i32 = arith.constant 0 : i32
    %c0_i32_0 = arith.constant 0 : i32
    %c0_i32_1 = arith.constant 0 : i32
    return %c0_i32, %c0_i32_0 : i32, i32
  }
  func.func @transform_2(%arg0: i32) -> (i32, i32) {
    %c0_i32 = arith.constant 0 : i32
    %c0_i32_0 = arith.constant 0 : i32
    %c0_i32_1 = arith.constant 0 : i32
    return %c0_i32, %c0_i32_0 : i32, i32
  }
  func.func @transform_3(%arg0: i32) -> (i32, i32) {
    %c0_i32 = arith.constant 0 : i32
    %c0_i32_0 = arith.constant 0 : i32
    %c0_i32_1 = arith.constant 0 : i32
    return %c0_i32, %c0_i32_0 : i32, i32
  }
  func.func @transform_4(%arg0: i32) -> (i32, i32) {
    %c0_i32 = arith.constant 0 : i32
    %c0_i32_0 = arith.constant 0 : i32
    %c0_i32_1 = arith.constant 0 : i32
    return %c0_i32, %c0_i32_0 : i32, i32
  }
  func.func @transform_5(%arg0: i32) -> (i32, i32) {
    %c0_i32 = arith.constant 0 : i32
    %c0_i32_0 = arith.constant 0 : i32
    return %arg0, %c0_i32 : i32, i32
  }
}

</mosaic_0001>

<llo_original>
// kernel: tpu_custom_call.1
$region0: #{tpu_custom_call.1}
  #allocation0 [shape = 'u32[]', space=smem, size = 0x4, offset = 0x4, fixed_abs, tag = 'smem constant byte address 0x4 - core index']
  #allocation1 [shape = 'u32[72,128]{1,0:T(1,128)}', space=vmem, size = 0x9000, scoped, tag = 'internal scratch']
  %s0 = inlined_call_operand.vmem [shape: f32[8,16], index: 0, kind: input, shape index: {}]
  %s1 = inlined_call_operand.vmem [shape: f32[16,32], index: 1, kind: input, shape index: {}]
  %s2 = inlined_call_operand.vmem [shape: f32[1,32], index: 2, kind: input, shape index: {}]
  %s3 = inlined_call_operand.vmem [shape: f32[32,4], index: 3, kind: input, shape index: {}]
  %s4 = inlined_call_operand.vmem [shape: f32[1,4], index: 4, kind: input, shape index: {}]
  %s5 = inlined_call_operand.vmem [shape: f32[8,4], index: 5, kind: output, shape index: {}]
  %s6 = sld [smem:[#allocation0]]
  $region30: #{tpu_custom_call.1} parent=0
    _
  %s8 = ssub.s32 1, %s6
  %s9 = scalar_select 0, %s8, %s6
  // Predicated region
  $region2: #{tpu_custom_call.1} parent=0 // pred_check
    _
  $region3: #{tpu_custom_call.1} parent=0 // pred_check_branch
    %11 = sbr.rel (0) target = $region5
  $region4: #{tpu_custom_call.1} parent=0 // pred_region
    _
  $region5: #{tpu_custom_call.1} parent=0 // pred_fallthru
    _
  // Predicated region
  $region6: #{tpu_custom_call.1} parent=0 // pred_check
    _
  $region7: #{tpu_custom_call.1} parent=0 // pred_check_branch
    %13 = sbr.rel (0) target = $region9
  $region8: #{tpu_custom_call.1} parent=0 // pred_region
    _
  $region9: #{tpu_custom_call.1} parent=0 // pred_fallthru
    _
  // Predicated region
  $region10: #{tpu_custom_call.1} parent=0 // pred_check
    _
  $region11: #{tpu_custom_call.1} parent=0 // pred_check_branch
    %15 = sbr.rel (0) target = $region13
  $region12: #{tpu_custom_call.1} parent=0 // pred_region
    _
  $region13: #{tpu_custom_call.1} parent=0 // pred_fallthru
    _
  // Predicated region
  $region14: #{tpu_custom_call.1} parent=0 // pred_check
    _
  $region15: #{tpu_custom_call.1} parent=0 // pred_check_branch
    %17 = sbr.rel (0) target = $region17
  $region16: #{tpu_custom_call.1} parent=0 // pred_region
    _
  $region17: #{tpu_custom_call.1} parent=0 // pred_fallthru
    _
  // Predicated region
  $region18: #{tpu_custom_call.1} parent=0 // pred_check
    _
  $region19: #{tpu_custom_call.1} parent=0 // pred_check_branch
    %19 = sbr.rel (0) target = $region21
  $region20: #{tpu_custom_call.1} parent=0 // pred_region
    _
  $region21: #{tpu_custom_call.1} parent=0 // pred_fallthru
    _
  %v20 = vld [vmem:[%s0] sm:$0xff]
  %v21 = vld [vmem:[%s1] sm:$0xff]
  %v22 = vld [vmem:[%s1 + $0x8] sm:$0xff]
  %v23 = vld [vmem:[%s2] sm:$0x1]
  %v25 = vperm.slane %v23, 0
  %vm27 = vcmask 130048
  %v29 = vsel %vm27, %v20, 0
  %31 = vmatpush.msra.mxu0 0.0
  %32 = vmatpush.msra.mxu0 0.0
  %33 = vmatpush.msra.mxu0 0.0
  %34 = vmatpush.msra.mxu0 0.0
  %35 = vmatpush.msra.mxu0 0.0
  %36 = vmatpush.msra.mxu0 0.0
  %37 = vmatpush.msra.mxu0 0.0
  %38 = vmatpush.msra.mxu0 0.0
  %39 = vmatpush.msra.mxu0 0.0
  %40 = vmatpush.msra.mxu0 0.0
  %41 = vmatpush.msra.mxu0 0.0
  %42 = vmatpush.msra.mxu0 0.0
  %43 = vmatpush.msra.mxu0 0.0
  %44 = vmatpush.msra.mxu0 0.0
  %45 = vmatpush.msra.mxu0 %v22
  %46 = vmatpush.msra.mxu0 %v21
  %47 = vmatmul.f32.gmra.mxu0 %v29
  %v48 = vpop.f32.mrf.mxu0
  %v49 = vadd.f32 %v25, %v48
  %50 = vdwg.mxu0
  %v51 = vmax.f32 %v49, 0.0
  %v52 = vld [vmem:[%s3] sm:$0xff]
  %v53 = vld [vmem:[%s3 + $0x8] sm:$0xff]
  %v54 = vld [vmem:[%s3 + $0x10] sm:$0xff]
  %v55 = vld [vmem:[%s3 + $0x18] sm:$0xff]
  %v56 = vld [vmem:[%s4] sm:$0x1]
  %v58 = vperm.slane %v56, 0
  %vm60 = vcmask 261120
  %v62 = vsel %vm60, %v51, 0
  %64 = vmatpush.msra.mxu0 0.0
  %65 = vmatpush.msra.mxu0 0.0
  %66 = vmatpush.msra.mxu0 0.0
  %67 = vmatpush.msra.mxu0 0.0
  %68 = vmatpush.msra.mxu0 0.0
  %69 = vmatpush.msra.mxu0 0.0
  %70 = vmatpush.msra.mxu0 0.0
  %71 = vmatpush.msra.mxu0 0.0
  %72 = vmatpush.msra.mxu0 0.0
  %73 = vmatpush.msra.mxu0 0.0
  %74 = vmatpush.msra.mxu0 0.0
  %75 = vmatpush.msra.mxu0 0.0
  %76 = vmatpush.msra.mxu0 %v55
  %77 = vmatpush.msra.mxu0 %v54
  %78 = vmatpush.msra.mxu0 %v53
  %79 = vmatpush.msra.mxu0 %v52
  %80 = vmatmul.f32.gmra.mxu0 %v62
  %v81 = vpop.f32.mrf.mxu0
  %v82 = vadd.f32 %v58, %v81
  %83 = vdwg.mxu0
  %v84 = vtanh.pop %v82
  %vm85 = vcmask 31744
  %86 = vst.msk [vmem:[%s5] sm:$0xff] %vm85, %v84
  // Predicated region
  $region22: #{tpu_custom_call.1} parent=0 // pred_check
    _
  $region23: #{tpu_custom_call.1} parent=0 // pred_check_branch
    %88 = sbr.rel (0) target = $region25
  $region24: #{tpu_custom_call.1} parent=0 // pred_region
    _
  $region25: #{tpu_custom_call.1} parent=0 // pred_fallthru
    _
  // Predicated region
  $region26: #{tpu_custom_call.1} parent=0 // pred_check
    _
  $region27: #{tpu_custom_call.1} parent=0 // pred_check_branch
    %90 = sbr.rel (0) target = $region29
  $region28: #{tpu_custom_call.1} parent=0 // pred_region
    _
  $region29: #{tpu_custom_call.1} parent=0 // pred_fallthru
    _

</llo_original>
